<compile_context>
chip_gen: v5e
topology: v5e:2x2
jax: 0.10.0
libtpu: 0.0.40
codegen_flags: <defaults>
</compile_context>

<pallas_src>
import jax
import jax.numpy as jnp
from jax import lax
from jax.experimental import pallas as pl
from jax.experimental.pallas import tpu as pltpu


def _round_up(v, m):
    return ((v + m - 1) // m) * m


def _pick_spatial_tile(n):
    """Largest lane-friendly tile (multiple of 128, <= 2048) dividing n, else n."""
    if n % 128 != 0:
        return n
    t = min(n, 2048)
    while n % t != 0 or t % 128 != 0:
        t -= 128
    return t


def _pick_row_block(h, w):
    """Output rows (torch 'w1') per grid step: ~128 output lanes worth, dividing W."""
    if h % 8 != 0:
        return w          # TW1*H must be sublane-aligned or the full dim
    t = max(1, min(w, 128 // w if w <= 128 else 1))
    while w % t != 0:
        t -= 1
    return max(t, 1)


def _vmem_limit(bytes_needed):
    """Scoped-VMEM limit derived from the block sizes, capped by the chip."""
    try:
        cap = pltpu.get_tpu_info().vmem_capacity_bytes
    except Exception:
        cap = 64 * 1024 * 1024        # conservative (v7x per-TC) fallback
    want = max(int(1.25 * bytes_needed), 32 * 1024 * 1024)
    return int(min(want, int(0.9 * cap)))


def _proj_kernel(x_ref, w_ref, b_ref, out_ref):
    """Stacked 1x1-conv on one spatial tile: out = [Wq;Wk;Wv] @ x + [bq;bk;bv]."""
    out_ref[...] = (
        jnp.dot(w_ref[...], x_ref[...], preferred_element_type=jnp.float32)
        + b_ref[...]
    ).astype(out_ref.dtype)


def _attn_kernel(qt_ref, k_ref, vt_ref, x_ref, gamma_ref, out_ref, acc_ref):
    """Fused energy + softmax + aggregation + residual for TW1 output rows.

    Grid step (b, r) handles output rows w1 in [r*TW1, (r+1)*TW1).  Note: the
    torch regrouping makes the final output's *height* index equal the energy
    tensor's w1 index (valid because H == W is asserted in the wrapper).

      qt_ref : (TW1*H, Cqp)   q rows, row index = w1_local*H + h1
      k_ref  : (H, Cqp, W)    all keys, grouped by image row h2   (per-batch)
      vt_ref : (W, C, H)      all values, vt[h2, c, h1] = v[c, h1, h2]
      x_ref  : (TW1, C, W)    residual rows x[b, :, w1, :]
      out    : (TW1, C, W)
      acc    : (TW1, C, W)    f32 accumulator over the in-kernel h2 loop
    """
    tw1 = acc_ref.shape[0]
    h_dim = k_ref.shape[0]

    acc_ref[...] = jnp.zeros_like(acc_ref)
    q = qt_ref[...]                                          # (TW1*H, Cqp)

    def h2_body(h2, carry):
        k_h2 = k_ref[h2]                                     # (Cqp, W)
        v_h2 = vt_ref[h2]                                    # (C, H)

        # energy[(w1,h1), w2] = sum_cq q[(w1,h1), cq] * k[cq, h2, w2]
        e = jnp.dot(q, k_h2, preferred_element_type=jnp.float32)   # (TW1*H, W)

        # torch softmax(energy, dim=-1): for fixed (w1, h2) every row of this
        # block is exactly one softmax group -> single pass, no masking.
        m = jnp.max(e, axis=-1, keepdims=True)
        p = jnp.exp(e - m)
        l = jnp.sum(p, axis=-1, keepdims=True)
        a = p * pl.reciprocal(l, approx=True)                # one EUP recip / row

        # out[w1, c, w2] += sum_h1 v[c, h1, h2] * a[(w1,h1), w2]
        for i in range(tw1):                                 # static, H-aligned slices
            a_i = a[i * h_dim:(i + 1) * h_dim, :]            # (H, W)
            acc_ref[i] += jnp.dot(v_h2, a_i,
                                  preferred_element_type=jnp.float32)
        return carry

    lax.fori_loop(0, h_dim, h2_body, 0)

    g = gamma_ref[0, 0]
    out_ref[...] = (g * acc_ref[...]
                    + x_ref[...].astype(jnp.float32)).astype(out_ref.dtype)


def criss_cross_attention(x, params):
    """x: (B, C, H, W) float32 NCHW.  Returns (B, C, H, W)."""
    B, C, H, W = x.shape
    # TODO(synk): the module's permute(0,1,3,2,4)+view only regroups coherently
    # for square spatial maps; only H == W is implemented here.
    assert H == W, "CrissCrossAttention permute/view regrouping requires H == W"
    N = H * W
    Cq = params["wq"].shape[0]
    Cqp = max(8, _round_up(Cq, 8))      # pad q/k rows to an f32 sublane multiple
    Ctot = 2 * Cqp + C

    def pad_rows(a, rows):
        return jnp.pad(a, ((0, rows - a.shape[0]), (0, 0)))

    # Stack [Wq; Wk; Wv] -> one MXU matmul (padded rows are zero => exact).
    w_stk = jnp.concatenate([pad_rows(params["wq"], Cqp),
                             pad_rows(params["wk"], Cqp),
                             params["wv"]], axis=0)               # (Ctot, C)
    b_stk = jnp.concatenate([pad_rows(params["bq"], Cqp),
                             pad_rows(params["bk"], Cqp),
                             params["bv"]], axis=0)               # (Ctot, 1)

    # ---------------- Kernel 1: projection, tiled over the spatial axis -----
    TN = _pick_spatial_tile(N)
    x_flat = x.reshape(B, C, N)
    k1_bytes = 4 * 2 * (C * TN + Ctot * C + Ctot + Ctot * TN)
    qkv = pl.pallas_call(
        _proj_kernel,
        grid=(B, N // TN),
        in_specs=[
            pl.BlockSpec((None, C, TN), lambda b, n: (b, 0, n)),   # x tile
            pl.BlockSpec((Ctot, C), lambda b, n: (0, 0)),          # stacked W
            pl.BlockSpec((Ctot, 1), lambda b, n: (0, 0)),          # stacked bias
        ],
        out_specs=pl.BlockSpec((None, Ctot, TN), lambda b, n: (b, 0, n)),
        out_shape=jax.ShapeDtypeStruct((B, Ctot, N), jnp.float32),
        compiler_params=pltpu.CompilerParams(
            dimension_semantics=("parallel", "parallel"),
            vmem_limit_bytes=_vmem_limit(k1_bytes)),
    )(x_flat, w_stk, b_stk)

    # O(C*N) layout plumbing in XLA (cheap; the N^2 attention never leaves the
    # kernel).  These fold the torch permute(0,1,3,2,4) into BlockSpec indexing.
    q = qkv[:, :Cqp].reshape(B, Cqp, H, W)
    k = qkv[:, Cqp:2 * Cqp].reshape(B, Cqp, H, W)
    v = qkv[:, 2 * Cqp:].reshape(B, C, H, W)
    qt3 = q.transpose(0, 3, 2, 1).reshape(B, W * H, Cqp)  # [b, w1*H+h1, cq]
    k4 = k.transpose(0, 2, 1, 3)                          # [b, h2, cq, w2]
    vt4 = v.transpose(0, 3, 1, 2)                         # [b, h2, c,  h1]
    xr = x.transpose(0, 2, 1, 3)                          # [b, w1, c,  w2]

    # ---------------- Kernel 2: fused attention ----------------------------
    TW1 = _pick_row_block(H, W)
    k2_bytes = 4 * (2 * (TW1 * H * Cqp + H * Cqp * W + W * C * H
                         + 2 * TW1 * C * W)
                    + TW1 * C * W)
    # (k4 / vt4 are batch-resident; pl.Buffered(1) would halve their footprint
    #  on VMEM-tight chips -- left at the default double-buffering here.)

    out4 = pl.pallas_call(
        _attn_kernel,
        grid=(B, W // TW1),              # (batch, block of output rows w1)
        in_specs=[
            pl.BlockSpec((None, TW1 * H, Cqp), lambda b, r: (b, r, 0)),
            pl.BlockSpec((None, H, Cqp, W),    lambda b, r: (b, 0, 0, 0)),
            pl.BlockSpec((None, W, C, H),      lambda b, r: (b, 0, 0, 0)),
            pl.BlockSpec((None, TW1, C, W),    lambda b, r: (b, r, 0, 0)),
            pl.BlockSpec(memory_space=pltpu.MemorySpace.SMEM),     # gamma (1,1)
        ],
        out_specs=pl.BlockSpec((None, TW1, C, W), lambda b, r: (b, r, 0, 0)),
        out_shape=jax.ShapeDtypeStruct((B, W, C, W), jnp.float32),
        scratch_shapes=[pltpu.VMEM((TW1, C, W), jnp.float32)],
        compiler_params=pltpu.CompilerParams(
            dimension_semantics=("parallel", "parallel"),
            vmem_limit_bytes=_vmem_limit(k2_bytes)),
    )(qt3, k4, vt4, xr, params["gamma"])

    # out4[b, w1, c, w2] -> (B, C, H, W)
    return out4.transpose(0, 2, 1, 3)


def reference(x, p):
    """Pure-JAX mirror of the PyTorch forward, for verification."""
    B, C, H, W = x.shape
    N = H * W
    xf = x.reshape(B, C, N)

    def conv1x1(w, b):
        return jnp.einsum("oc,bcn->bon", w, xf) + b.reshape(1, -1, 1)

    q = conv1x1(p["wq"], p["bq"]).transpose(0, 2, 1)          # (B, N, Cq)
    k = conv1x1(p["wk"], p["bk"])                             # (B, Cq, N)
    v = conv1x1(p["wv"], p["bv"])                             # (B, C, N)
    energy = jnp.einsum("bnc,bcm->bnm", q, k).reshape(B, H, W, H, W)
    energy = jax.nn.softmax(energy, axis=-1)
    e = energy.transpose(0, 1, 3, 2, 4).reshape(B, N, N)
    out = jnp.einsum("bcn,bnm->bcm", v, e).reshape(B, C, H, W)
    return p["gamma"][0, 0] * out + x


def init_params(key, in_channels):
    cq = in_channels // 8
    k1, k2, k3, k4, k5, k6 = jax.random.split(key, 6)
    params = {
        "wq": 0.1 * jax.random.normal(k1, (cq, in_channels), jnp.float32),
        "bq": 0.1 * jax.random.normal(k2, (cq, 1), jnp.float32),
        "wk": 0.1 * jax.random.normal(k3, (cq, in_channels), jnp.float32),
        "bk": 0.1 * jax.random.normal(k4, (cq, 1), jnp.float32),
        "wv": 0.1 * jax.random.normal(k5, (in_channels, in_channels), jnp.float32),
        "bv": 0.1 * jax.random.normal(k6, (in_channels, 1), jnp.float32),
        # PyTorch __init__ sets gamma = 0 (output would trivially equal x);
        # use a deterministic nonzero value so the attention path is exercised.
        "gamma": jnp.full((1, 1), 0.5, jnp.float32),
    }
    return params


if __name__ == "__main__":
    B, C, H, W = 2, 16, 8, 8     # in_channels=16 -> query/key channels = 2
    key = jax.random.PRNGKey(0)
    kx, kp = jax.random.split(key)
    x = jax.random.normal(kx, (B, C, H, W), jnp.float32)
    params = init_params(kp, C)

    out = criss_cross_attention(x, params)
    out = jax.block_until_ready(out)

    ref = reference(x, params)
    assert out.shape == (B, C, H, W)
    # Tolerance allows the EUP approx-reciprocal used for the softmax denom.
    assert jnp.allclose(out, ref, rtol=2e-3, atol=2e-3), (
        f"max abs err {jnp.max(jnp.abs(out - ref))}")
    print("KERNEL_OK")
</pallas_src>

<mosaic_0001>
module attributes {stable_mosaic.version = 11 : i64} {
  func.func @_proj_kernel(%arg0: i32, %arg1: i32, %arg2: memref<1x16x64xf32, #tpu.memory_space<vmem>>, %arg3: memref<32x16xf32, #tpu.memory_space<vmem>>, %arg4: memref<32x1xf32, #tpu.memory_space<vmem>>, %arg5: memref<1x32x64xf32, #tpu.memory_space<vmem>>) attributes {dimension_semantics = [#tpu.dimension_semantics<parallel>, #tpu.dimension_semantics<parallel>], iteration_bounds = array<i64: 2, 1>, scalar_prefetch = 0 : i64, scratch_operands = 0 : i64, tpu.core_type = #tpu.core_type<tc>, window_params = [{transform_indices = @transform_0, window_bounds = array<i64: 1, 16, 64>}, {pipeline_mode = #tpu.pipeline_mode<synchronous>, transform_indices = @transform_1, window_bounds = array<i64: 32, 16>}, {pipeline_mode = #tpu.pipeline_mode<synchronous>, transform_indices = @transform_2, window_bounds = array<i64: 32, 1>}, {transform_indices = @transform_3, window_bounds = array<i64: 1, 32, 64>}]} {
    %c0 = arith.constant 0 : index
    %c0_0 = arith.constant 0 : index
    %0 = vector.load %arg3[%c0, %c0_0] : memref<32x16xf32, #tpu.memory_space<vmem>>, vector<32x16xf32>
    %c0_1 = arith.constant 0 : index
    %c0_2 = arith.constant 0 : index
    %c0_3 = arith.constant 0 : index
    %1 = vector.load %arg2[%c0_1, %c0_2, %c0_3] : memref<1x16x64xf32, #tpu.memory_space<vmem>>, vector<1x16x64xf32>
    %2 = vector.shape_cast %1 : vector<1x16x64xf32> to vector<16x64xf32>
    %cst = arith.constant dense<0.000000e+00> : vector<32x64xf32>
    %3 = tpu.matmul %0, %2, %cst {dimension_numbers = #tpu.dot_dimension_numbers<[1], [0], [0], [1], [0, 0, 1, 1], [], []>} : vector<32x16xf32>, vector<16x64xf32>, vector<32x64xf32> -> vector<32x64xf32>
    %c0_4 = arith.constant 0 : index
    %c0_5 = arith.constant 0 : index
    %4 = vector.load %arg4[%c0_4, %c0_5] : memref<32x1xf32, #tpu.memory_space<vmem>>, vector<32x1xf32>
    %5 = vector.broadcast %4 : vector<32x1xf32> to vector<32x64xf32>
    %6 = arith.addf %3, %5 : vector<32x64xf32>
    %c0_6 = arith.constant 0 : index
    %c0_7 = arith.constant 0 : index
    %c0_8 = arith.constant 0 : index
    %7 = vector.load %arg5[%c0_6, %c0_7, %c0_8] : memref<1x32x64xf32, #tpu.memory_space<vmem>>, vector<1x32x64xf32>
    %8 = vector.shape_cast %7 : vector<1x32x64xf32> to vector<32x64xf32>
    %9 = vector.shape_cast %6 : vector<32x64xf32> to vector<1x32x64xf32>
    tpu.vector_store %arg5[%c0_6, %c0_7, %c0_8], %9 {strides = array<i32>} : memref<1x32x64xf32, #tpu.memory_space<vmem>>, vector<1x32x64xf32>,
    return
  }
  func.func @transform_0(%arg0: i32, %arg1: i32) -> (i32, i32, i32) {
    %c0_i32 = arith.constant 0 : i32
    %c0_i32_0 = arith.constant 0 : i32
    return %arg0, %c0_i32, %arg1 : i32, i32, i32
  }
  func.func @transform_1(%arg0: i32, %arg1: i32) -> (i32, i32) {
    %c0_i32 = arith.constant 0 : i32
    %c0_i32_0 = arith.constant 0 : i32
    %c0_i32_1 = arith.constant 0 : i32
    return %c0_i32, %c0_i32_0 : i32, i32
  }
  func.func @transform_2(%arg0: i32, %arg1: i32) -> (i32, i32) {
    %c0_i32 = arith.constant 0 : i32
    %c0_i32_0 = arith.constant 0 : i32
    %c0_i32_1 = arith.constant 0 : i32
    return %c0_i32, %c0_i32_0 : i32, i32
  }
  func.func @transform_3(%arg0: i32, %arg1: i32) -> (i32, i32, i32) {
    %c0_i32 = arith.constant 0 : i32
    %c0_i32_0 = arith.constant 0 : i32
    return %arg0, %c0_i32, %arg1 : i32, i32, i32
  }
}

</mosaic_0001>

<llo_original>
// kernel: tpu_custom_call.1
$region0: #{tpu_custom_call.1}
  #allocation0 [shape = 'u32[]', space=smem, size = 0x4, offset = 0x4, fixed_abs, tag = 'smem constant byte address 0x4 - core index']
  #allocation1 [shape = 'u32[72,128]{1,0:T(1,128)}', space=vmem, size = 0x9000, scoped, tag = 'internal scratch']
  %s0 = inlined_call_operand.vmem [shape: f32[2,16,64], index: 0, kind: input, shape index: {}]
  %s1 = inlined_call_operand.vmem [shape: f32[32,16], index: 1, kind: input, shape index: {}]
  %s2 = inlined_call_operand.vmem [shape: f32[32,1], index: 2, kind: input, shape index: {}]
  %s3 = inlined_call_operand.hbm [shape: f32[2,32,64], index: 3, kind: output, shape index: {}]
  %s4 = sld [smem:[#allocation0]]
  $region45: #{tpu_custom_call.1} parent=0
    _
  %s6 = ssub.s32 1, %s4
  %s7 = scalar_select 0, %s6, %s4
  $region1: #{tpu_custom_call.1} parent=0
    #allocation2 [shape = 'u8[32768]{0}', space=vmem, size = 0x8000, scoped, tag = 'output window, operand 0']
    #allocation3 [shape = 's32[2]{0}', space=sflag, size = 0x8, scoped, tag = 'scoped memory for tpu_custom_call.1']
    %8 = vsyncpa [#allocation3], 0
    %s9 = scalar_lea.sflag [#allocation3], 1
    %10 = vsyncpa %s9, 0
    loop: start=0, step=1, limit=4
    $region2: #{tpu_custom_call.1} parent=1 // loop_pre_header
      _
    $region3: #{tpu_custom_call.1} parent=1 // loop_header
      %s12 = sphi 0, %s16
      %p13 = scmp.ge.s32.totalorder %s12, 4
      %s19 = sphi 0, %s31
      %s20 = sphi 0, %s27
      %s21 = sphi 0, %s19
      %s22 = sphi 0, %s20
      %s23 = sphi 0, %s21
      %s24 = sphi 0, %s22
      %s36 = sphi 0, %s38
      %s39 = sphi 0, %s36
      %s40 = sphi 0, %s39
      %s56 = sphi 0, %s40
      %s60 = sphi 0, %s60
      %s62 = sphi 0, %s60
      %s63 = sphi 0, %s62
      %s77 = sphi 0, %s63
      %s81 = sphi 0, %s81
      %s83 = sphi 0, %s81
      %s84 = sphi 0, %s83
      %s98 = sphi 0, %s84
      %s106 = sphi 0, %s108
      %s109 = sphi 0, %s106
      %s110 = sphi 0, %s109
      %s126 = sphi 0, %s110
    $region4: #{tpu_custom_call.1} parent=1 // loop_header_branch
      %15 = sbr.rel (%p13) target = $region8
    $region5: #{tpu_custom_call.1} parent=1 // loop_body
      %s17 = ssub.s32 %s12, 1
      %s18 = ssub.s32 %s12, 2
      %s25 = sadd.s32 1, %s20
      %p26 = scmp.ge.s32.totalorder %s25, 1
      %s27 = scalar_select %p26, 0, %s25
      %s28 = sadd.s32 1, %s19
      %s29 = scalar_select %p26, %s28, %s19
      %p30 = scmp.ge.s32.totalorder %s29, 2
      %s31 = scalar_select %p30, 0, %s29
      %s32 = ssub.s32 %s19, %s31
      %s33 = ssub.s32 %s20, %s27
      %s34 = sor.u32 %s32, %s33
      %p35 = scmp.eq.s32.totalorder %s34, 0
      %s37 = sadd.s32 %s36, 1
      %s38 = scalar_select %p35, %s36, %s37
      %p41 = pneg %p35
      %p42 = scmp.eq.s32.totalorder %s12, 1
      %p43 = por %p41, %p42
      %p44 = scmp.ne.s32.totalorder %s36, %s39
      %p45 = scmp.eq.s32.totalorder %s12, 0
      %p46 = por %p44, %p45
      %p47 = scmp.ne.s32.totalorder %s36, %s39
      %p48 = scmp.eq.s32.totalorder %s17, 1
      %p49 = por %p47, %p48
      %p50 = scmp.ne.s32.totalorder %s39, %s40
      %p51 = scmp.eq.s32.totalorder %s17, 0
      %p52 = por %p50, %p51
      %p53 = scmp.ne.s32.totalorder %s39, %s40
      %p54 = scmp.eq.s32.totalorder %s18, 1
      %p55 = por %p53, %p54
      %p57 = scmp.ne.s32.totalorder %s40, %s56
      %p58 = scmp.eq.s32.totalorder %s18, 0
      %p59 = por %p57, %p58
      %s61 = sadd.s32 %s60, 1
      %p64 = scmp.eq.s32.totalorder %s12, 1
      %p65 = scmp.ne.s32.totalorder %s60, %s62
      %p66 = scmp.eq.s32.totalorder %s12, 0
      %p67 = por %p65, %p66
      %p68 = scmp.ne.s32.totalorder %s60, %s62
      %p69 = scmp.eq.s32.totalorder %s17, 1
      %p70 = por %p68, %p69
      %p71 = scmp.ne.s32.totalorder %s62, %s63
      %p72 = scmp.eq.s32.totalorder %s17, 0
      %p73 = por %p71, %p72
      %p74 = scmp.ne.s32.totalorder %s62, %s63
      %p75 = scmp.eq.s32.totalorder %s18, 1
      %p76 = por %p74, %p75
      %p78 = scmp.ne.s32.totalorder %s63, %s77
      %p79 = scmp.eq.s32.totalorder %s18, 0
      %p80 = por %p78, %p79
      %s82 = sadd.s32 %s81, 1
      %p85 = scmp.eq.s32.totalorder %s12, 1
      %p86 = scmp.ne.s32.totalorder %s81, %s83
      %p87 = scmp.eq.s32.totalorder %s12, 0
      %p88 = por %p86, %p87
      %p89 = scmp.ne.s32.totalorder %s81, %s83
      %p90 = scmp.eq.s32.totalorder %s17, 1
      %p91 = por %p89, %p90
      %p92 = scmp.ne.s32.totalorder %s83, %s84
      %p93 = scmp.eq.s32.totalorder %s17, 0
      %p94 = por %p92, %p93
      %p95 = scmp.ne.s32.totalorder %s83, %s84
      %p96 = scmp.eq.s32.totalorder %s18, 1
      %p97 = por %p95, %p96
      %p99 = scmp.ne.s32.totalorder %s84, %s98
      %p100 = scmp.eq.s32.totalorder %s18, 0
      %p101 = por %p99, %p100
      %s102 = ssub.s32 %s19, %s31
      %s103 = ssub.s32 %s20, %s27
      %s104 = sor.u32 %s102, %s103
      %p105 = scmp.eq.s32.totalorder %s104, 0
      %s107 = sadd.s32 %s106, 1
      %s108 = scalar_select %p105, %s106, %s107
      %p111 = pneg %p105
      %p112 = scmp.eq.s32.totalorder %s12, 1
      %p113 = por %p111, %p112
      %p114 = scmp.ne.s32.totalorder %s106, %s109
      %p115 = scmp.eq.s32.totalorder %s12, 0
      %p116 = por %p114, %p115
      %p117 = scmp.ne.s32.totalorder %s106, %s109
      %p118 = scmp.eq.s32.totalorder %s17, 1
      %p119 = por %p117, %p118
      %p120 = scmp.ne.s32.totalorder %s109, %s110
      %p121 = scmp.eq.s32.totalorder %s17, 0
      %p122 = por %p120, %p121
      %p123 = scmp.ne.s32.totalorder %s109, %s110
      %p124 = scmp.eq.s32.totalorder %s18, 1
      %p125 = por %p123, %p124
      %p127 = scmp.ne.s32.totalorder %s110, %s126
      %p128 = scmp.eq.s32.totalorder %s18, 0
      %p129 = por %p127, %p128
      %p130 = scmp.le.s32.totalorder 1, %s12
      %p131 = scmp.lt.s32.totalorder %s12, 3
      %p132 = pnand %p130, %p131
      %p133 = pneg %p132
      // Predicated region
      $region9: #{tpu_custom_call.1} parent=5 // pred_check
        _
      $region10: #{tpu_custom_call.1} parent=5 // pred_check_branch
        %135 = sbr.rel (%p132) target = $region12
      $region11: #{tpu_custom_call.1} parent=5 // pred_region
        %s136 = ssub.s32 %s12, 1
        // Predicated region
        $region13: #{tpu_custom_call.1} parent=11 // pred_check
          %p137 = pneg %p73
        $region14: #{tpu_custom_call.1} parent=11 // pred_check_branch
          %139 = sbr.rel (%p137) target = $region16
        $region15: #{tpu_custom_call.1} parent=11 // pred_region
          _
        $region16: #{tpu_custom_call.1} parent=11 // pred_fallthru
          _
        // Predicated region
        $region17: #{tpu_custom_call.1} parent=11 // pred_check
          %p140 = pneg %p94
        $region18: #{tpu_custom_call.1} parent=11 // pred_check_branch
          %142 = sbr.rel (%p140) target = $region20
        $region19: #{tpu_custom_call.1} parent=11 // pred_region
          _
        $region20: #{tpu_custom_call.1} parent=11 // pred_fallthru
          _
      $region12: #{tpu_custom_call.1} parent=5 // pred_fallthru
        _
      %p143 = scmp.lt.s32.totalorder %s12, 2
      // Predicated region
      $region21: #{tpu_custom_call.1} parent=5 // pred_check
        %p144 = pneg %p143
      $region22: #{tpu_custom_call.1} parent=5 // pred_check_branch
        %146 = sbr.rel (%p144) target = $region24
      $region23: #{tpu_custom_call.1} parent=5 // pred_region
        // Predicated region
        $region25: #{tpu_custom_call.1} parent=23 // pred_check
          %p147 = pneg %p46
        $region26: #{tpu_custom_call.1} parent=23 // pred_check_branch
          %149 = sbr.rel (%p147) target = $region28
        $region27: #{tpu_custom_call.1} parent=23 // pred_region
          %p150 = scmp.lt.s32.totalorder %s19, 1
          %s151 = scalar_select %p150, %s19, 1
          %p152 = scmp.lt.s32.totalorder %s20, 0
          %s153 = scalar_select %p152, %s20, 0
          %s154 = smul.addr %s151, 2
          %s155 = sadd.s32 %s153, %s154
          %s156 = smul.addr %s155, 8
          %s157 = scalar_lea.vmem %s0, %s156
        $region28: #{tpu_custom_call.1} parent=23 // pred_fallthru
          _
      $region24: #{tpu_custom_call.1} parent=5 // pred_fallthru
        _
      %p158 = scmp.le.s32.totalorder 1, %s12
      %p159 = scmp.lt.s32.totalorder %s12, 3
      %p160 = pnand %p158, %p159
      %p161 = pneg %p160
      // Predicated region
      $region29: #{tpu_custom_call.1} parent=5 // pred_check
        _
      $region30: #{tpu_custom_call.1} parent=5 // pred_check_branch
        %163 = sbr.rel (%p160) target = $region32
      $region31: #{tpu_custom_call.1} parent=5 // pred_region
        %s164 = ssub.s32 %s12, 1
        %p165 = scmp.lt.s32.totalorder %s21, 1
        %s166 = scalar_select %p165, %s21, 1
        %p167 = scmp.lt.s32.totalorder %s22, 0
        %s168 = scalar_select %p167, %s22, 0
        %s169 = smul.addr %s166, 2
        %s170 = sadd.s32 %s168, %s169
        %s171 = smul.addr %s170, 8
        %s172 = scalar_lea.vmem %s0, %s171
        %p173 = pneg %p52
        %p174 = pneg %p49
        %p175 = pneg %p73
        %p176 = pneg %p70
        %p177 = pneg %p94
        %p178 = pneg %p91
        %p179 = pneg %p122
        %p180 = pneg %p119
        %s181 = sand.u32 %s109, 1
        %s182 = scalar_lea.sflag [#allocation3], %s181
        %s183 = sand.u32 %s109, 1
        %s184 = smul.addr %s183, 32
        %s185 = scalar_lea.vmem [#allocation2], %s184
        %p186 = scmp.lt.s32.totalorder %s21, 1
        %s187 = scalar_select %p186, %s21, 1
        %p188 = scmp.lt.s32.totalorder %s22, 0
        %s189 = scalar_select %p188, %s22, 0
        %s190 = smul.addr %s187, 2
        %s191 = sadd.s32 %s189, %s190
        %s192 = smul.addr %s191, 8
        %s193 = scalar_lea.vmem %s0, %s192
        %v194 = vld [vmem:[%s1] sm:$0xff]
        %v195 = vld [vmem:[%s1 + $0x8] sm:$0xff]
        %v196 = vld [vmem:[%s1 + $0x10] sm:$0xff]
        %v197 = vld [vmem:[%s1 + $0x18] sm:$0xff]
        %v198 = vld [vmem:[%s193] sm:$0xff]
        %v199 = vld [vmem:[%s193 + $0x8] sm:$0xff]
        %v200 = vld [vmem:[%s2] sm:$0xff]
        %v201 = vld [vmem:[%s2 + $0x8] sm:$0xff]
        %v202 = vld [vmem:[%s2 + $0x10] sm:$0xff]
        %v203 = vld [vmem:[%s2 + $0x18] sm:$0xff]
        %205 = vset.pattern.permute.xlu0 0
        %206 = vperm.xlu0 %205, %v200
        %v207 = vpop.permute.xlu0 %206
        %210 = vset.pattern.permute.xlu0 0
        %211 = vperm.xlu0 %210, %v201
        %v212 = vpop.permute.xlu0 %211
        %215 = vset.pattern.permute.xlu0 0
        %216 = vperm.xlu0 %215, %v202
        %v217 = vpop.permute.xlu0 %216
        %220 = vset.pattern.permute.xlu0 0
        %221 = vperm.xlu0 %220, %v203
        %v222 = vpop.permute.xlu0 %221
        %vm224 = vcmask 130048
        %v226 = vsel %vm224, %v194, 0
        %v229 = vsel %vm224, %v195, 0
        %v232 = vsel %vm224, %v196, 0
        %v235 = vsel %vm224, %v197, 0
        %237 = vmatpush.msra.mxu0 0.0
        %238 = vmatpush.msra.mxu0 0.0
        %239 = vmatpush.msra.mxu0 0.0
        %240 = vmatpush.msra.mxu0 0.0
        %241 = vmatpush.msra.mxu0 0.0
        %242 = vmatpush.msra.mxu0 0.0
        %243 = vmatpush.msra.mxu0 0.0
        %244 = vmatpush.msra.mxu0 0.0
        %245 = vmatpush.msra.mxu0 0.0
        %246 = vmatpush.msra.mxu0 0.0
        %247 = vmatpush.msra.mxu0 0.0
        %248 = vmatpush.msra.mxu0 0.0
        %249 = vmatpush.msra.mxu0 0.0
        %250 = vmatpush.msra.mxu0 0.0
        %251 = vmatpush.msra.mxu0 %v199
        %252 = vmatpush.msra.mxu0 %v198
        %253 = vmatmul.f32.gmra.mxu0 %v226
        %v254 = vpop.f32.mrf.mxu0
        %v255 = vadd.f32 %v207, %v254
        %256 = vmatmul.f32.gmra.mxu0 %v229
        %v257 = vpop.f32.mrf.mxu0
        %v258 = vadd.f32 %v212, %v257
        %259 = vmatmul.f32.gmra.mxu0 %v232
        %v260 = vpop.f32.mrf.mxu0
        %v261 = vadd.f32 %v217, %v260
        %262 = vmatmul.f32.gmra.mxu0 %v235
        %v263 = vpop.f32.mrf.mxu0
        %v264 = vadd.f32 %v222, %v263
        %265 = vdwg.mxu0
        %vm266 = vcmask 523264
        %267 = vst.msk [vmem:[%s185] sm:$0xff] %vm266, %v255
        %268 = vst.msk [vmem:[%s185 + $0x8] sm:$0xff] %vm266, %v258
        %269 = vst.msk [vmem:[%s185 + $0x10] sm:$0xff] %vm266, %v261
        %270 = vst.msk [vmem:[%s185 + $0x18] sm:$0xff] %vm266, %v264
        %s271 = sand.u32 %s109, 1
        %s272 = scalar_lea.sflag [#allocation3], %s271
        %s273 = sand.u32 %s109, 1
        %s274 = smul.addr %s273, 32
        %s275 = scalar_lea.vmem [#allocation2], %s274
        // Predicated region
        $region33: #{tpu_custom_call.1} parent=31 // pred_check
          %p276 = pneg %p119
        $region34: #{tpu_custom_call.1} parent=31 // pred_check_branch
          %278 = sbr.rel (%p276) target = $region36
        $region35: #{tpu_custom_call.1} parent=31 // pred_region
          %280 = vsyncadd %s272, 0
          %s281 = smul.addr %s21, 4
          %s282 = sadd.s32 %s22, %s281
          %s283 = smul.addr %s282, 8
          %s284 = scalar_lea.hbm %s3, %s283
          %s285 = sshll.u32 %s275, 4
          %s286 = int_to_ptr.vmem [resolvable:$true] %s285
          %s287 = sshll.u32 %s284, 4
          %s288 = int_to_ptr.hbm [resolvable:$true] %s287
          %293 = dma.vmem_to_hbm [thread:$0]  %s286, 512, %s288, %s272, 128, 128, 8
        $region36: #{tpu_custom_call.1} parent=31 // pred_fallthru
          _
      $region32: #{tpu_custom_call.1} parent=5 // pred_fallthru
        _
      %p294 = scmp.le.s32.totalorder 2, %s12
      // Predicated region
      $region37: #{tpu_custom_call.1} parent=5 // pred_check
        %p295 = pneg %p294
      $region38: #{tpu_custom_call.1} parent=5 // pred_check_branch
        %297 = sbr.rel (%p295) target = $region40
      $region39: #{tpu_custom_call.1} parent=5 // pred_region
        %s298 = ssub.s32 %s12, 2
        // Predicated region
        $region41: #{tpu_custom_call.1} parent=39 // pred_check
          %p299 = pneg %p125
        $region42: #{tpu_custom_call.1} parent=39 // pred_check_branch
          %301 = sbr.rel (%p299) target = $region44
        $region43: #{tpu_custom_call.1} parent=39 // pred_region
          %s302 = sand.u32 %s110, 1
          %s303 = scalar_lea.sflag [#allocation3], %s302
          %s304 = sand.u32 %s110, 1
          %s305 = smul.addr %s304, 32
          %s306 = scalar_lea.vmem [#allocation2], %s305
          %308 = dma.done %s303, 512
        $region44: #{tpu_custom_call.1} parent=39 // pred_fallthru
          _
      $region40: #{tpu_custom_call.1} parent=5 // pred_fallthru
        _
    $region6: #{tpu_custom_call.1} parent=1 // loop_footer
      %s16 = sadd.s32 1, %s12
    $region7: #{tpu_custom_call.1} parent=1 // loop_footer_branch
      %11 = sbr.rel target = $region3
    $region8: #{tpu_custom_call.1} parent=1 // loop_exit
      _
    %309 = vsyncpa [#allocation3], 1
    %s310 = scalar_lea.sflag [#allocation3], 1
    %311 = vsyncpa %s310, 1

</llo_original>
